<compile_context>
chip_gen: v7x
topology: tpu7x:2x2x1
jax: 0.10.0
libtpu: 0.0.40
codegen_flags: <defaults>
</compile_context>

<pallas_src>
import functools

import numpy as np
import jax
import jax.numpy as jnp
from jax.experimental import pallas as pl
from jax.experimental.pallas import tpu as pltpu

EPS = 1e-5  # InstanceNorm2d default eps


def _deconv_instnorm_kernel(patch_ref, w_ref, gb_ref, out_ref):
    # patch_ref: (1, S2, D, OHWp) bf16 — per-phase im2col of the UN-dilated input
    # w_ref:     (S2, Cout, D)    bf16 — per-phase sub-kernels (missing taps = 0)
    # gb_ref:    (Cout, 2)        f32  — [gamma | beta]
    # out_ref:   (1, S2, Cout, OHWp) bf16
    s2 = w_ref.shape[0]
    cout = w_ref.shape[1]
    ohwp = patch_ref.shape[-1]

    # Pass 1: per-phase MXU matmuls (f32 accumulate) + running sum / sum-of-squares.
    # Single-pass var is fine at these magnitudes; switch to Welford when an OHW
    # grid axis with tile-wise accumulation is added (see TODO below).
    ys = []
    s1 = jnp.zeros((cout, 1), jnp.float32)
    sq = jnp.zeros((cout, 1), jnp.float32)
    for p in range(s2):  # static unroll, s2 is tiny
        y = jnp.dot(w_ref[p], patch_ref[0, p], preferred_element_type=jnp.float32)
        ys.append(y)                                        # (Cout, OHWp) f32
        s1 = s1 + jnp.sum(y, axis=-1, keepdims=True)
        sq = sq + jnp.sum(y * y, axis=-1, keepdims=True)

    # InstanceNorm2d (affine): per-channel stats over ALL spatial positions
    # (= all phases x OHWp lanes).  Fold into a single FMA-style epilogue.
    inv_n = jnp.float32(1.0 / (s2 * ohwp))
    mean = s1 * inv_n
    var = sq * inv_n - mean * mean
    gamma = gb_ref[:, 0:1]
    beta = gb_ref[:, 1:2]
    scale = jax.lax.rsqrt(var + EPS) * gamma                # (Cout, 1)
    shift = beta - mean * scale                             # (Cout, 1)

    # Pass 2: normalize and store each phase (full-block, bf16).
    # NOTE: on v6e/v7x (bf16 VALU) this epilogue could run in bf16 for 2x VALU rate;
    # kept in f32 for v5e portability — only the store is narrowed.
    for p in range(s2):
        out_ref[0, p] = (ys[p] * scale + shift).astype(out_ref.dtype)


def deconvolutional_layer(x, w_t, bias, gamma, beta, *, kernel_size, stride,
                          output_padding, padding=None, out_dtype=jnp.bfloat16):
    """x: (N, Cin, H, W) NCHW.  w_t: (Cin, Cout, K, K) (PyTorch ConvTranspose2d layout).

    `bias` is accepted for API parity but intentionally unused: a per-channel constant
    added before InstanceNorm is exactly removed by the mean subtraction.
    `padding` defaults to kernel_size // 2 (the module's construction)."""
    del bias
    n, cin, h, w = x.shape
    k, s = kernel_size, stride
    if padding is None:
        padding = k // 2
    cout = w_t.shape[1]
    oh = (h - 1) * s - 2 * padding + k + output_padding
    ow = (w - 1) * s - 2 * padding + k + output_padding
    if oh % s or ow % s:
        # TODO(synk): support output sizes that are not a multiple of stride
        # (phases with unequal spatial counts) via per-phase padding.
        raise NotImplementedError("sub-pixel path requires OH % stride == 0")
    ohp, owp = oh // s, ow // s
    ohwp = ohp * owp
    s2 = s * s
    tk = (k + s - 1) // s          # taps per phase per spatial dim (max)
    tkk = tk * tk
    d = cin * tkk                  # per-phase contraction depth
    d_pad = ((d + 15) // 16) * 16  # align to bf16 sublane packing
    pad = k - 1 - padding          # conv-equivalent left pad in dilated space

    # Conv-equivalent weight: flip spatially, swap in/out channels.
    w_conv = jnp.flip(w_t, axis=(2, 3)).transpose(1, 0, 2, 3)   # (Cout, Cin, K, K)

    # --- static per-phase tap tables -------------------------------------------------
    def taps_1d(phase):
        js = [j for j in range(k) if (j - (pad - phase)) % s == 0]
        bs = [(phase + j - pad) // s for j in js]   # exact ints, input-index offsets
        return js, bs

    row_taps = [taps_1d(pr) for pr in range(s)]
    col_taps = [taps_1d(pc) for pc in range(s)]

    def pad_amounts(taps, in_size, out_p):
        all_b = [b for (_, bs) in taps for b in bs]
        lo = max(0, -min(all_b))
        hi = max(0, max(all_b) + out_p - in_size)
        return lo, hi

    ph_lo, ph_hi = pad_amounts(row_taps, h, ohp)
    pw_lo, pw_hi = pad_amounts(col_taps, w, owp)

    # --- host-side glue, all in bf16 --------------------------------------------------
    xb = x.astype(jnp.bfloat16)
    xpad = jnp.pad(xb, ((0, 0), (0, 0), (ph_lo, ph_hi), (pw_lo, pw_hi)))

    zero_tap = jnp.zeros((n, cin, ohp, owp), jnp.bfloat16)
    zero_w = jnp.zeros((cout, cin), w_conv.dtype)
    phase_patches, phase_ws = [], []
    for pr in range(s):
        jhs, bhs = row_taps[pr]
        for pc in range(s):
            jws, bws = col_taps[pc]
            taps, wrows = [], []
            for ti in range(tk):
                for tj in range(tk):
                    if ti < len(jhs) and tj < len(jws):
                        hs = ph_lo + bhs[ti]
                        ws_ = pw_lo + bws[tj]
                        taps.append(xpad[:, :, hs:hs + ohp, ws_:ws_ + owp])
                        wrows.append(w_conv[:, :, jhs[ti], jws[tj]])
                    else:
                        taps.append(zero_tap)
                        wrows.append(zero_w)
            pp = jnp.stack(taps, axis=2).reshape(n, d, ohwp)       # (N, Cin*Tkk, OHWp)
            pw_mat = jnp.stack(wrows, axis=-1).reshape(cout, d)    # (Cout, Cin*Tkk)
            phase_patches.append(pp)
            phase_ws.append(pw_mat)

    patches = jnp.stack(phase_patches, axis=1)                     # (N, S2, D, OHWp) bf16
    w_mat = jnp.stack(phase_ws, axis=0).astype(jnp.bfloat16)       # (S2, Cout, D)
    if d_pad != d:
        patches = jnp.pad(patches, ((0, 0), (0, 0), (0, d_pad - d), (0, 0)))
        w_mat = jnp.pad(w_mat, ((0, 0), (0, 0), (0, d_pad - d)))
    gb = jnp.stack([gamma, beta], axis=1).astype(jnp.float32)      # (Cout, 2)

    out_bytes = n * s2 * cout * ohwp * np.dtype(out_dtype).itemsize
    cost = pl.CostEstimate(
        flops=2 * n * s2 * cout * d_pad * ohwp,
        transcendentals=n * cout,
        bytes_accessed=int(patches.size * 2 + w_mat.size * 2 + gb.size * 4 + out_bytes),
    )

    # TODO(synk): for large images add an OHWp grid axis ("arbitrary") with f32
    # sum/sumsq (Welford) scratch and a pl.when finalize; size that tile at ~half the
    # v6e choice on v7x (64 MiB VMEM). For N == 1 on v7x (2 TCs) also split OHWp
    # across a second "parallel" axis so both cores are busy.
    out_ph = pl.pallas_call(
        _deconv_instnorm_kernel,
        out_shape=jax.ShapeDtypeStruct((n, s2, cout, ohwp), out_dtype),
        grid_spec=pltpu.PrefetchScalarGridSpec(
            num_scalar_prefetch=0,
            grid=(n,),
            in_specs=[
                pl.BlockSpec((1, s2, d_pad, ohwp), lambda i: (i, 0, 0, 0)),
                pl.BlockSpec((s2, cout, d_pad), lambda i: (0, 0, 0)),
                pl.BlockSpec((cout, 2), lambda i: (0, 0)),
            ],
            out_specs=pl.BlockSpec((1, s2, cout, ohwp), lambda i: (i, 0, 0, 0)),
        ),
        compiler_params=pltpu.CompilerParams(
            dimension_semantics=("parallel",),
            vmem_limit_bytes=32 * 1024 * 1024,
        ),
        cost_estimate=cost,
    )(patches, w_mat, gb)

    # (N, S2, Cout, OHp, OWp) -> NCHW: interleave the stride^2 phases back into the
    # spatial grid (output-side glue on bf16 data).
    out = out_ph.reshape(n, s, s, cout, ohp, owp)
    out = out.transpose(0, 3, 4, 1, 5, 2).reshape(n, cout, oh, ow)
    return out


def _reference(x, w_t, bias, gamma, beta, *, kernel_size, stride, output_padding):
    """Pure-JAX f32 reference: lhs-dilated conv (== ConvTranspose2d) + instance norm."""
    k = kernel_size
    padding = k // 2
    pad = k - 1 - padding
    w_conv = jnp.flip(w_t, axis=(2, 3)).transpose(1, 0, 2, 3)      # (Cout, Cin, K, K)
    y = jax.lax.conv_general_dilated(
        x, w_conv, window_strides=(1, 1),
        padding=[(pad, pad + output_padding), (pad, pad + output_padding)],
        lhs_dilation=(stride, stride),
        dimension_numbers=("NCHW", "OIHW", "NCHW"))
    y = y + bias[None, :, None, None]
    mean = y.mean(axis=(2, 3), keepdims=True)
    var = ((y - mean) ** 2).mean(axis=(2, 3), keepdims=True)
    y_hat = (y - mean) / jnp.sqrt(var + EPS)
    return y_hat * gamma[None, :, None, None] + beta[None, :, None, None]


if __name__ == "__main__":
    # Module config: DeconvolutionalLayer(in=4, out=8, kernel=3, stride=2, output_padding=1)
    N, CIN, COUT, H, W = 2, 4, 8, 8, 8
    K, STRIDE, OUT_PAD = 3, 2, 1

    key = jax.random.PRNGKey(0)
    kx, kw, kb, kg, kbe = jax.random.split(key, 5)
    x = jax.random.normal(kx, (N, CIN, H, W), jnp.float32)
    # ConvTranspose2d weight layout: (in_channels, out_channels, K, K)
    w_t = jax.random.normal(kw, (CIN, COUT, K, K), jnp.float32) * 0.1
    bias = jax.random.normal(kb, (COUT,), jnp.float32) * 0.1
    # InstanceNorm2d affine params (PyTorch inits gamma=1, beta=0; randomized to exercise them)
    gamma = 1.0 + 0.1 * jax.random.normal(kg, (COUT,), jnp.float32)
    beta = 0.1 * jax.random.normal(kbe, (COUT,), jnp.float32)

    fwd = jax.jit(functools.partial(
        deconvolutional_layer, kernel_size=K, stride=STRIDE, output_padding=OUT_PAD))
    out = jax.block_until_ready(fwd(x, w_t, bias, gamma, beta))

    ref = _reference(x, w_t, bias, gamma, beta,
                     kernel_size=K, stride=STRIDE, output_padding=OUT_PAD)

    assert out.shape == (N, COUT, 16, 16), out.shape
    # bf16 MXU operands and bf16 output -> compare against the f32 reference at
    # bf16-level tolerance (rtol covers large values, atol covers values near zero).
    np.testing.assert_allclose(np.asarray(out.astype(jnp.float32)), np.asarray(ref),
                               rtol=5e-2, atol=5e-2)
    print("KERNEL_OK")
</pallas_src>

<mosaic_0001>
module attributes {stable_mosaic.version = 11 : i64} {
  func.func @_deconv_instnorm_kernel(%arg0: i32, %arg1: memref<1x4x16x64xbf16, #tpu.memory_space<vmem>>, %arg2: memref<4x8x16xbf16, #tpu.memory_space<vmem>>, %arg3: memref<8x2xf32, #tpu.memory_space<vmem>>, %arg4: memref<1x4x8x64xbf16, #tpu.memory_space<vmem>>) attributes {dimension_semantics = [#tpu.dimension_semantics<parallel>], iteration_bounds = array<i64: 2>, scalar_prefetch = 0 : i64, scratch_operands = 0 : i64, tpu.core_type = #tpu.core_type<tc>, window_params = [{transform_indices = @transform_0, window_bounds = array<i64: 1, 4, 16, 64>}, {pipeline_mode = #tpu.pipeline_mode<synchronous>, transform_indices = @transform_1, window_bounds = array<i64: 4, 8, 16>}, {pipeline_mode = #tpu.pipeline_mode<synchronous>, transform_indices = @transform_2, window_bounds = array<i64: 8, 2>}, {transform_indices = @transform_3, window_bounds = array<i64: 1, 4, 8, 64>}]} {
    %cst = arith.constant 0.000000e+00 : f32
    %0 = vector.broadcast %cst : f32 to vector<8x1xf32>
    %cst_0 = arith.constant 0.000000e+00 : f32
    %1 = vector.broadcast %cst_0 : f32 to vector<8x1xf32>
    %c0 = arith.constant 0 : index
    %c0_1 = arith.constant 0 : index
    %c0_2 = arith.constant 0 : index
    %2 = vector.load %arg2[%c0, %c0_1, %c0_2] : memref<4x8x16xbf16, #tpu.memory_space<vmem>>, vector<1x8x16xbf16>
    %3 = vector.shape_cast %2 : vector<1x8x16xbf16> to vector<8x16xbf16>
    %c0_3 = arith.constant 0 : index
    %c0_4 = arith.constant 0 : index
    %c0_5 = arith.constant 0 : index
    %c0_6 = arith.constant 0 : index
    %4 = vector.load %arg1[%c0_3, %c0_4, %c0_5, %c0_6] : memref<1x4x16x64xbf16, #tpu.memory_space<vmem>>, vector<1x1x16x64xbf16>
    %5 = vector.shape_cast %4 : vector<1x1x16x64xbf16> to vector<16x64xbf16>
    %cst_7 = arith.constant dense<0.000000e+00> : vector<8x64xf32>
    %6 = tpu.matmul %3, %5, %cst_7 {dimension_numbers = #tpu.dot_dimension_numbers<[1], [0], [0], [1], [0, 0, 1, 1], [], []>} : vector<8x16xbf16>, vector<16x64xbf16>, vector<8x64xf32> -> vector<8x64xf32>
    %cst_8 = arith.constant dense<0.000000e+00> : vector<8xf32>
    %7 = vector.multi_reduction <add>, %6, %cst_8 [1] : vector<8x64xf32> to vector<8xf32>
    %8 = vector.shape_cast %7 : vector<8xf32> to vector<8x1xf32>
    %9 = arith.addf %0, %8 : vector<8x1xf32>
    %10 = arith.mulf %6, %6 : vector<8x64xf32>
    %cst_9 = arith.constant dense<0.000000e+00> : vector<8xf32>
    %11 = vector.multi_reduction <add>, %10, %cst_9 [1] : vector<8x64xf32> to vector<8xf32>
    %12 = vector.shape_cast %11 : vector<8xf32> to vector<8x1xf32>
    %13 = arith.addf %1, %12 : vector<8x1xf32>
    %c1 = arith.constant 1 : index
    %c0_10 = arith.constant 0 : index
    %c0_11 = arith.constant 0 : index
    %14 = vector.load %arg2[%c1, %c0_10, %c0_11] : memref<4x8x16xbf16, #tpu.memory_space<vmem>>, vector<1x8x16xbf16>
    %15 = vector.shape_cast %14 : vector<1x8x16xbf16> to vector<8x16xbf16>
    %c0_12 = arith.constant 0 : index
    %c1_13 = arith.constant 1 : index
    %c0_14 = arith.constant 0 : index
    %c0_15 = arith.constant 0 : index
    %16 = vector.load %arg1[%c0_12, %c1_13, %c0_14, %c0_15] : memref<1x4x16x64xbf16, #tpu.memory_space<vmem>>, vector<1x1x16x64xbf16>
    %17 = vector.shape_cast %16 : vector<1x1x16x64xbf16> to vector<16x64xbf16>
    %cst_16 = arith.constant dense<0.000000e+00> : vector<8x64xf32>
    %18 = tpu.matmul %15, %17, %cst_16 {dimension_numbers = #tpu.dot_dimension_numbers<[1], [0], [0], [1], [0, 0, 1, 1], [], []>} : vector<8x16xbf16>, vector<16x64xbf16>, vector<8x64xf32> -> vector<8x64xf32>
    %cst_17 = arith.constant dense<0.000000e+00> : vector<8xf32>
    %19 = vector.multi_reduction <add>, %18, %cst_17 [1] : vector<8x64xf32> to vector<8xf32>
    %20 = vector.shape_cast %19 : vector<8xf32> to vector<8x1xf32>
    %21 = arith.addf %9, %20 : vector<8x1xf32>
    %22 = arith.mulf %18, %18 : vector<8x64xf32>
    %cst_18 = arith.constant dense<0.000000e+00> : vector<8xf32>
    %23 = vector.multi_reduction <add>, %22, %cst_18 [1] : vector<8x64xf32> to vector<8xf32>
    %24 = vector.shape_cast %23 : vector<8xf32> to vector<8x1xf32>
    %25 = arith.addf %13, %24 : vector<8x1xf32>
    %c2 = arith.constant 2 : index
    %c0_19 = arith.constant 0 : index
    %c0_20 = arith.constant 0 : index
    %26 = vector.load %arg2[%c2, %c0_19, %c0_20] : memref<4x8x16xbf16, #tpu.memory_space<vmem>>, vector<1x8x16xbf16>
    %27 = vector.shape_cast %26 : vector<1x8x16xbf16> to vector<8x16xbf16>
    %c0_21 = arith.constant 0 : index
    %c2_22 = arith.constant 2 : index
    %c0_23 = arith.constant 0 : index
    %c0_24 = arith.constant 0 : index
    %28 = vector.load %arg1[%c0_21, %c2_22, %c0_23, %c0_24] : memref<1x4x16x64xbf16, #tpu.memory_space<vmem>>, vector<1x1x16x64xbf16>
    %29 = vector.shape_cast %28 : vector<1x1x16x64xbf16> to vector<16x64xbf16>
    %cst_25 = arith.constant dense<0.000000e+00> : vector<8x64xf32>
    %30 = tpu.matmul %27, %29, %cst_25 {dimension_numbers = #tpu.dot_dimension_numbers<[1], [0], [0], [1], [0, 0, 1, 1], [], []>} : vector<8x16xbf16>, vector<16x64xbf16>, vector<8x64xf32> -> vector<8x64xf32>
    %cst_26 = arith.constant dense<0.000000e+00> : vector<8xf32>
    %31 = vector.multi_reduction <add>, %30, %cst_26 [1] : vector<8x64xf32> to vector<8xf32>
    %32 = vector.shape_cast %31 : vector<8xf32> to vector<8x1xf32>
    %33 = arith.addf %21, %32 : vector<8x1xf32>
    %34 = arith.mulf %30, %30 : vector<8x64xf32>
    %cst_27 = arith.constant dense<0.000000e+00> : vector<8xf32>
    %35 = vector.multi_reduction <add>, %34, %cst_27 [1] : vector<8x64xf32> to vector<8xf32>
    %36 = vector.shape_cast %35 : vector<8xf32> to vector<8x1xf32>
    %37 = arith.addf %25, %36 : vector<8x1xf32>
    %c3 = arith.constant 3 : index
    %c0_28 = arith.constant 0 : index
    %c0_29 = arith.constant 0 : index
    %38 = vector.load %arg2[%c3, %c0_28, %c0_29] : memref<4x8x16xbf16, #tpu.memory_space<vmem>>, vector<1x8x16xbf16>
    %39 = vector.shape_cast %38 : vector<1x8x16xbf16> to vector<8x16xbf16>
    %c0_30 = arith.constant 0 : index
    %c3_31 = arith.constant 3 : index
    %c0_32 = arith.constant 0 : index
    %c0_33 = arith.constant 0 : index
    %40 = vector.load %arg1[%c0_30, %c3_31, %c0_32, %c0_33] : memref<1x4x16x64xbf16, #tpu.memory_space<vmem>>, vector<1x1x16x64xbf16>
    %41 = vector.shape_cast %40 : vector<1x1x16x64xbf16> to vector<16x64xbf16>
    %cst_34 = arith.constant dense<0.000000e+00> : vector<8x64xf32>
    %42 = tpu.matmul %39, %41, %cst_34 {dimension_numbers = #tpu.dot_dimension_numbers<[1], [0], [0], [1], [0, 0, 1, 1], [], []>} : vector<8x16xbf16>, vector<16x64xbf16>, vector<8x64xf32> -> vector<8x64xf32>
    %cst_35 = arith.constant dense<0.000000e+00> : vector<8xf32>
    %43 = vector.multi_reduction <add>, %42, %cst_35 [1] : vector<8x64xf32> to vector<8xf32>
    %44 = vector.shape_cast %43 : vector<8xf32> to vector<8x1xf32>
    %45 = arith.addf %33, %44 : vector<8x1xf32>
    %46 = arith.mulf %42, %42 : vector<8x64xf32>
    %cst_36 = arith.constant dense<0.000000e+00> : vector<8xf32>
    %47 = vector.multi_reduction <add>, %46, %cst_36 [1] : vector<8x64xf32> to vector<8xf32>
    %48 = vector.shape_cast %47 : vector<8xf32> to vector<8x1xf32>
    %49 = arith.addf %37, %48 : vector<8x1xf32>
    %cst_37 = arith.constant 3.906250e-03 : f32
    %50 = vector.broadcast %cst_37 : f32 to vector<8x1xf32>
    %51 = arith.mulf %45, %50 : vector<8x1xf32>
    %cst_38 = arith.constant 3.906250e-03 : f32
    %52 = vector.broadcast %cst_38 : f32 to vector<8x1xf32>
    %53 = arith.mulf %49, %52 : vector<8x1xf32>
    %54 = arith.mulf %51, %51 : vector<8x1xf32>
    %55 = arith.subf %53, %54 : vector<8x1xf32>
    %c0_39 = arith.constant 0 : index
    %c0_40 = arith.constant 0 : index
    %56 = vector.load %arg3[%c0_39, %c0_40] : memref<8x2xf32, #tpu.memory_space<vmem>>, vector<8x1xf32>
    %c0_41 = arith.constant 0 : index
    %c1_42 = arith.constant 1 : index
    %57 = vector.load %arg3[%c0_41, %c1_42] : memref<8x2xf32, #tpu.memory_space<vmem>>, vector<8x1xf32>
    %cst_43 = arith.constant 9.99999974E-6 : f32
    %58 = vector.broadcast %cst_43 : f32 to vector<8x1xf32>
    %59 = arith.addf %55, %58 : vector<8x1xf32>
    %60 = math.rsqrt %59 : vector<8x1xf32>
    %61 = arith.mulf %60, %56 : vector<8x1xf32>
    %62 = arith.mulf %51, %61 : vector<8x1xf32>
    %63 = arith.subf %57, %62 : vector<8x1xf32>
    %64 = vector.broadcast %61 : vector<8x1xf32> to vector<8x64xf32>
    %65 = arith.mulf %6, %64 : vector<8x64xf32>
    %66 = vector.broadcast %63 : vector<8x1xf32> to vector<8x64xf32>
    %67 = arith.addf %65, %66 : vector<8x64xf32>
    %68 = arith.truncf %67 : vector<8x64xf32> to vector<8x64xbf16>
    %c0_44 = arith.constant 0 : index
    %c0_45 = arith.constant 0 : index
    %c0_46 = arith.constant 0 : index
    %c0_47 = arith.constant 0 : index
    %69 = vector.load %arg4[%c0_44, %c0_45, %c0_46, %c0_47] : memref<1x4x8x64xbf16, #tpu.memory_space<vmem>>, vector<1x1x8x64xbf16>
    %70 = vector.shape_cast %69 : vector<1x1x8x64xbf16> to vector<8x64xbf16>
    %71 = vector.shape_cast %68 : vector<8x64xbf16> to vector<1x1x8x64xbf16>
    tpu.vector_store %arg4[%c0_44, %c0_45, %c0_46, %c0_47], %71 {strides = array<i32>} : memref<1x4x8x64xbf16, #tpu.memory_space<vmem>>, vector<1x1x8x64xbf16>,
    %72 = vector.broadcast %61 : vector<8x1xf32> to vector<8x64xf32>
    %73 = arith.mulf %18, %72 : vector<8x64xf32>
    %74 = vector.broadcast %63 : vector<8x1xf32> to vector<8x64xf32>
    %75 = arith.addf %73, %74 : vector<8x64xf32>
    %76 = arith.truncf %75 : vector<8x64xf32> to vector<8x64xbf16>
    %c0_48 = arith.constant 0 : index
    %c1_49 = arith.constant 1 : index
    %c0_50 = arith.constant 0 : index
    %c0_51 = arith.constant 0 : index
    %77 = vector.load %arg4[%c0_48, %c1_49, %c0_50, %c0_51] : memref<1x4x8x64xbf16, #tpu.memory_space<vmem>>, vector<1x1x8x64xbf16>
    %78 = vector.shape_cast %77 : vector<1x1x8x64xbf16> to vector<8x64xbf16>
    %79 = vector.shape_cast %76 : vector<8x64xbf16> to vector<1x1x8x64xbf16>
    tpu.vector_store %arg4[%c0_48, %c1_49, %c0_50, %c0_51], %79 {strides = array<i32>} : memref<1x4x8x64xbf16, #tpu.memory_space<vmem>>, vector<1x1x8x64xbf16>,
    %80 = vector.broadcast %61 : vector<8x1xf32> to vector<8x64xf32>
    %81 = arith.mulf %30, %80 : vector<8x64xf32>
    %82 = vector.broadcast %63 : vector<8x1xf32> to vector<8x64xf32>
    %83 = arith.addf %81, %82 : vector<8x64xf32>
    %84 = arith.truncf %83 : vector<8x64xf32> to vector<8x64xbf16>
    %c0_52 = arith.constant 0 : index
    %c2_53 = arith.constant 2 : index
    %c0_54 = arith.constant 0 : index
    %c0_55 = arith.constant 0 : index
    %85 = vector.load %arg4[%c0_52, %c2_53, %c0_54, %c0_55] : memref<1x4x8x64xbf16, #tpu.memory_space<vmem>>, vector<1x1x8x64xbf16>
    %86 = vector.shape_cast %85 : vector<1x1x8x64xbf16> to vector<8x64xbf16>
    %87 = vector.shape_cast %84 : vector<8x64xbf16> to vector<1x1x8x64xbf16>
    tpu.vector_store %arg4[%c0_52, %c2_53, %c0_54, %c0_55], %87 {strides = array<i32>} : memref<1x4x8x64xbf16, #tpu.memory_space<vmem>>, vector<1x1x8x64xbf16>,
    %88 = vector.broadcast %61 : vector<8x1xf32> to vector<8x64xf32>
    %89 = arith.mulf %42, %88 : vector<8x64xf32>
    %90 = vector.broadcast %63 : vector<8x1xf32> to vector<8x64xf32>
    %91 = arith.addf %89, %90 : vector<8x64xf32>
    %92 = arith.truncf %91 : vector<8x64xf32> to vector<8x64xbf16>
    %c0_56 = arith.constant 0 : index
    %c3_57 = arith.constant 3 : index
    %c0_58 = arith.constant 0 : index
    %c0_59 = arith.constant 0 : index
    %93 = vector.load %arg4[%c0_56, %c3_57, %c0_58, %c0_59] : memref<1x4x8x64xbf16, #tpu.memory_space<vmem>>, vector<1x1x8x64xbf16>
    %94 = vector.shape_cast %93 : vector<1x1x8x64xbf16> to vector<8x64xbf16>
    %95 = vector.shape_cast %92 : vector<8x64xbf16> to vector<1x1x8x64xbf16>
    tpu.vector_store %arg4[%c0_56, %c3_57, %c0_58, %c0_59], %95 {strides = array<i32>} : memref<1x4x8x64xbf16, #tpu.memory_space<vmem>>, vector<1x1x8x64xbf16>,
    return
  }
  func.func @transform_0(%arg0: i32) -> (i32, i32, i32, i32) {
    %c0_i32 = arith.constant 0 : i32
    %c0_i32_0 = arith.constant 0 : i32
    %c0_i32_1 = arith.constant 0 : i32
    %c0_i32_2 = arith.constant 0 : i32
    return %arg0, %c0_i32, %c0_i32_0, %c0_i32_1 : i32, i32, i32, i32
  }
  func.func @transform_1(%arg0: i32) -> (i32, i32, i32) {
    %c0_i32 = arith.constant 0 : i32
    %c0_i32_0 = arith.constant 0 : i32
    %c0_i32_1 = arith.constant 0 : i32
    %c0_i32_2 = arith.constant 0 : i32
    return %c0_i32, %c0_i32_0, %c0_i32_1 : i32, i32, i32
  }
  func.func @transform_2(%arg0: i32) -> (i32, i32) {
    %c0_i32 = arith.constant 0 : i32
    %c0_i32_0 = arith.constant 0 : i32
    %c0_i32_1 = arith.constant 0 : i32
    return %c0_i32, %c0_i32_0 : i32, i32
  }
  func.func @transform_3(%arg0: i32) -> (i32, i32, i32, i32) {
    %c0_i32 = arith.constant 0 : i32
    %c0_i32_0 = arith.constant 0 : i32
    %c0_i32_1 = arith.constant 0 : i32
    %c0_i32_2 = arith.constant 0 : i32
    return %arg0, %c0_i32, %c0_i32_0, %c0_i32_1 : i32, i32, i32, i32
  }
}

</mosaic_0001>

<llo_original>
// kernel: deconvolutional_layer.1
$region0: #{deconvolutional_layer.1}
  #allocation0 [shape = 'u32[]', space=smem, size = 0x4, offset = 0x4, fixed_abs, tag = 'smem constant byte address 0x4 - core index']
  #allocation1 [shape = 'u32[144,128]{1,0:T(1,128)}', space=vmem, size = 0x12000, scoped, tag = 'internal scratch']
  %s0 = inlined_call_operand.vmem [shape: bf16[2,4,16,64], index: 0, kind: input, shape index: {}]
  %s1 = inlined_call_operand.vmem [shape: bf16[4,8,16], index: 1, kind: input, shape index: {}]
  %s2 = inlined_call_operand.vmem [shape: f32[8,2], index: 2, kind: input, shape index: {}]
  %s3 = inlined_call_operand.vmem [shape: bf16[2,4,8,64], index: 3, kind: output, shape index: {}]
  %s4 = sld [smem:[#allocation0]]
  $region45: #{deconvolutional_layer.1} parent=0
    _
  %s6 = ssub.s32 1, %s4
  %s7 = scalar_select 0, %s6, %s4
  loop: start=0, step=1, limit=4
  $region2: #{deconvolutional_layer.1} parent=0 // loop_pre_header
    _
  $region3: #{deconvolutional_layer.1} parent=0 // loop_header
    %s9 = sphi 0, %s13
    %p10 = scmp.ge.s32.totalorder %s9, 4
    %s19 = sphi 0, %s21
    %s22 = sphi 0, %s19
    %s23 = sphi 0, %s22
    %s39 = sphi 0, %s23
    %s43 = sphi 0, %s43
    %s45 = sphi 0, %s43
    %s46 = sphi 0, %s45
    %s60 = sphi 0, %s46
    %s64 = sphi 0, %s64
    %s66 = sphi 0, %s64
    %s67 = sphi 0, %s66
    %s81 = sphi 0, %s67
    %s87 = sphi 0, %s89
    %s90 = sphi 0, %s87
    %s91 = sphi 0, %s90
    %s107 = sphi 0, %s91
  $region4: #{deconvolutional_layer.1} parent=0 // loop_header_branch
    %12 = sbr.rel (%p10) target = $region8
  $region5: #{deconvolutional_layer.1} parent=0 // loop_body
    %s14 = ssub.s32 %s9, 1
    %s15 = ssub.s32 %s9, 2
    %s16 = sadd.s32 %s9, 1
    %s17 = ssub.s32 %s9, %s16
    %p18 = scmp.eq.s32.totalorder %s17, 0
    %s20 = sadd.s32 %s19, 1
    %s21 = scalar_select %p18, %s19, %s20
    %p24 = pneg %p18
    %p25 = scmp.eq.s32.totalorder %s9, 1
    %p26 = por %p24, %p25
    %p27 = scmp.ne.s32.totalorder %s19, %s22
    %p28 = scmp.eq.s32.totalorder %s9, 0
    %p29 = por %p27, %p28
    %p30 = scmp.ne.s32.totalorder %s19, %s22
    %p31 = scmp.eq.s32.totalorder %s14, 1
    %p32 = por %p30, %p31
    %p33 = scmp.ne.s32.totalorder %s22, %s23
    %p34 = scmp.eq.s32.totalorder %s14, 0
    %p35 = por %p33, %p34
    %p36 = scmp.ne.s32.totalorder %s22, %s23
    %p37 = scmp.eq.s32.totalorder %s15, 1
    %p38 = por %p36, %p37
    %p40 = scmp.ne.s32.totalorder %s23, %s39
    %p41 = scmp.eq.s32.totalorder %s15, 0
    %p42 = por %p40, %p41
    %s44 = sadd.s32 %s43, 1
    %p47 = scmp.eq.s32.totalorder %s9, 1
    %p48 = scmp.ne.s32.totalorder %s43, %s45
    %p49 = scmp.eq.s32.totalorder %s9, 0
    %p50 = por %p48, %p49
    %p51 = scmp.ne.s32.totalorder %s43, %s45
    %p52 = scmp.eq.s32.totalorder %s14, 1
    %p53 = por %p51, %p52
    %p54 = scmp.ne.s32.totalorder %s45, %s46
    %p55 = scmp.eq.s32.totalorder %s14, 0
    %p56 = por %p54, %p55
    %p57 = scmp.ne.s32.totalorder %s45, %s46
    %p58 = scmp.eq.s32.totalorder %s15, 1
    %p59 = por %p57, %p58
    %p61 = scmp.ne.s32.totalorder %s46, %s60
    %p62 = scmp.eq.s32.totalorder %s15, 0
    %p63 = por %p61, %p62
    %s65 = sadd.s32 %s64, 1
    %p68 = scmp.eq.s32.totalorder %s9, 1
    %p69 = scmp.ne.s32.totalorder %s64, %s66
    %p70 = scmp.eq.s32.totalorder %s9, 0
    %p71 = por %p69, %p70
    %p72 = scmp.ne.s32.totalorder %s64, %s66
    %p73 = scmp.eq.s32.totalorder %s14, 1
    %p74 = por %p72, %p73
    %p75 = scmp.ne.s32.totalorder %s66, %s67
    %p76 = scmp.eq.s32.totalorder %s14, 0
    %p77 = por %p75, %p76
    %p78 = scmp.ne.s32.totalorder %s66, %s67
    %p79 = scmp.eq.s32.totalorder %s15, 1
    %p80 = por %p78, %p79
    %p82 = scmp.ne.s32.totalorder %s67, %s81
    %p83 = scmp.eq.s32.totalorder %s15, 0
    %p84 = por %p82, %p83
    %s85 = ssub.s32 %s9, %s16
    %p86 = scmp.eq.s32.totalorder %s85, 0
    %s88 = sadd.s32 %s87, 1
    %s89 = scalar_select %p86, %s87, %s88
    %p92 = pneg %p86
    %p93 = scmp.eq.s32.totalorder %s9, 1
    %p94 = por %p92, %p93
    %p95 = scmp.ne.s32.totalorder %s87, %s90
    %p96 = scmp.eq.s32.totalorder %s9, 0
    %p97 = por %p95, %p96
    %p98 = scmp.ne.s32.totalorder %s87, %s90
    %p99 = scmp.eq.s32.totalorder %s14, 1
    %p100 = por %p98, %p99
    %p101 = scmp.ne.s32.totalorder %s90, %s91
    %p102 = scmp.eq.s32.totalorder %s14, 0
    %p103 = por %p101, %p102
    %p104 = scmp.ne.s32.totalorder %s90, %s91
    %p105 = scmp.eq.s32.totalorder %s15, 1
    %p106 = por %p104, %p105
    %p108 = scmp.ne.s32.totalorder %s91, %s107
    %p109 = scmp.eq.s32.totalorder %s15, 0
    %p110 = por %p108, %p109
    %p111 = scmp.le.s32.totalorder 1, %s9
    %p112 = scmp.lt.s32.totalorder %s9, 3
    %p113 = pnand %p111, %p112
    %p114 = pneg %p113
    // Predicated region
    $region9: #{deconvolutional_layer.1} parent=5 // pred_check
      _
    $region10: #{deconvolutional_layer.1} parent=5 // pred_check_branch
      %116 = sbr.rel (%p113) target = $region12
    $region11: #{deconvolutional_layer.1} parent=5 // pred_region
      %s117 = ssub.s32 %s9, 1
      // Predicated region
      $region13: #{deconvolutional_layer.1} parent=11 // pred_check
        %p118 = pneg %p56
      $region14: #{deconvolutional_layer.1} parent=11 // pred_check_branch
        %120 = sbr.rel (%p118) target = $region16
      $region15: #{deconvolutional_layer.1} parent=11 // pred_region
        _
      $region16: #{deconvolutional_layer.1} parent=11 // pred_fallthru
        _
      // Predicated region
      $region17: #{deconvolutional_layer.1} parent=11 // pred_check
        %p121 = pneg %p77
      $region18: #{deconvolutional_layer.1} parent=11 // pred_check_branch
        %123 = sbr.rel (%p121) target = $region20
      $region19: #{deconvolutional_layer.1} parent=11 // pred_region
        _
      $region20: #{deconvolutional_layer.1} parent=11 // pred_fallthru
        _
    $region12: #{deconvolutional_layer.1} parent=5 // pred_fallthru
      _
    %p124 = scmp.lt.s32.totalorder %s9, 2
    // Predicated region
    $region21: #{deconvolutional_layer.1} parent=5 // pred_check
      %p125 = pneg %p124
    $region22: #{deconvolutional_layer.1} parent=5 // pred_check_branch
      %127 = sbr.rel (%p125) target = $region24
    $region23: #{deconvolutional_layer.1} parent=5 // pred_region
      // Predicated region
      $region25: #{deconvolutional_layer.1} parent=23 // pred_check
        %p128 = pneg %p29
      $region26: #{deconvolutional_layer.1} parent=23 // pred_check_branch
        %130 = sbr.rel (%p128) target = $region28
      $region27: #{deconvolutional_layer.1} parent=23 // pred_region
        %p131 = scmp.lt.s32.totalorder %s9, 1
        %s132 = scalar_select %p131, %s9, 1
        %s133 = smul.addr %s132, 8
        %s134 = smul.addr %s133, 4
        %s135 = scalar_lea.vmem %s0, %s134
      $region28: #{deconvolutional_layer.1} parent=23 // pred_fallthru
        _
    $region24: #{deconvolutional_layer.1} parent=5 // pred_fallthru
      _
    %p136 = scmp.le.s32.totalorder 1, %s9
    %p137 = scmp.lt.s32.totalorder %s9, 3
    %p138 = pnand %p136, %p137
    %p139 = pneg %p138
    // Predicated region
    $region29: #{deconvolutional_layer.1} parent=5 // pred_check
      _
    $region30: #{deconvolutional_layer.1} parent=5 // pred_check_branch
      %141 = sbr.rel (%p138) target = $region32
    $region31: #{deconvolutional_layer.1} parent=5 // pred_region
      %s142 = ssub.s32 %s9, 1
      %p143 = scmp.lt.s32.totalorder %s14, 1
      %s144 = scalar_select %p143, %s14, 1
      %s145 = smul.addr %s144, 8
      %s146 = smul.addr %s145, 4
      %s147 = scalar_lea.vmem %s0, %s146
      %p148 = pneg %p35
      %p149 = pneg %p32
      %p150 = pneg %p56
      %p151 = pneg %p53
      %p152 = pneg %p77
      %p153 = pneg %p74
      %p154 = pneg %p103
      %p155 = pneg %p100
      %p156 = scmp.lt.s32.totalorder %s14, 1
      %s157 = scalar_select %p156, %s14, 1
      %s158 = smul.addr %s157, 4
      %s159 = smul.addr %s158, 4
      %s160 = scalar_lea.vmem %s3, %s159
      %p161 = scmp.lt.s32.totalorder %s14, 1
      %s162 = scalar_select %p161, %s14, 1
      %s163 = smul.addr %s162, 8
      %s164 = smul.addr %s163, 4
      %s165 = scalar_lea.vmem %s0, %s164
      %p166 = scmp.lt.s32.totalorder %s14, 1
      %s167 = scalar_select %p166, %s14, 1
      %s168 = smul.addr %s167, 4
      %s169 = smul.addr %s168, 4
      %s170 = scalar_lea.vmem %s3, %s169
      %v172 = vld [vmem:[%s1] sm:$0xf]
      %v173 = vld [vmem:[%s165] sm:$0xf]
      %v174 = vld [vmem:[%s165 + $0x4] sm:$0xf]
      %v177 = vunpack.c.l.b16 %v173
      %v178 = vunpack.c.l.b16 %v174
      %v179 = vpack.c.b16 %v178, %v177
      %vm181 = vcmask 130048
      %v183 = vsel %vm181, %v172, 0
      %185 = vmatprep.subr.bf16.mxu0 0
      %186 = vmatpush1.bf16.msra.mxu0 %v179
      %187 = vmatprep.subr.bf16.mxu0 0
      %188 = vmatpush1.bf16.msra.mxu0 0
      %189 = vmatprep.subr.bf16.mxu0 0
      %190 = vmatpush1.bf16.msra.mxu0 0
      %191 = vmatprep.subr.bf16.mxu0 0
      %192 = vmatpush1.bf16.msra.mxu0 0
      %193 = vmatprep.subr.bf16.mxu0 0
      %194 = vmatpush1.bf16.msra.mxu0 0
      %195 = vmatprep.subr.bf16.mxu0 0
      %196 = vmatpush1.bf16.msra.mxu0 0
      %197 = vmatprep.subr.bf16.mxu0 0
      %198 = vmatpush1.bf16.msra.mxu0 0
      %199 = vmatprep.subr.bf16.mxu0 0
      %200 = vmatpush1.bf16.msra.mxu0 0
      %201 = vmatprep.subr.bf16.mxu0 0
      %202 = vmatpush1.bf16.msra.mxu0 0
      %203 = vmatprep.subr.bf16.mxu0 0
      %204 = vmatpush1.bf16.msra.mxu0 0
      %205 = vmatprep.subr.bf16.mxu0 0
      %206 = vmatpush1.bf16.msra.mxu0 0
      %207 = vmatprep.subr.bf16.mxu0 0
      %208 = vmatpush1.bf16.msra.mxu0 0
      %209 = vmatprep.subr.bf16.mxu0 0
      %210 = vmatpush1.bf16.msra.mxu0 0
      %211 = vmatprep.subr.bf16.mxu0 0
      %212 = vmatpush1.bf16.msra.mxu0 0
      %213 = vmatprep.subr.bf16.mxu0 0
      %214 = vmatpush1.bf16.msra.mxu0 0
      %215 = vmatprep.subr.bf16.mxu0 0
      %216 = vmatpush1.bf16.msra.mxu0 0
      %217 = vmatprep.mubr.bf16.mxu0 0
      %218 = vmatmul.mubr.bf16.gmra.mrb[0].mxu0 %v183
      %v219 = vpop.f32.mrb[0].mxu0
      %v220 = vadd.f32 0.0, %v219
      %v221 = vpop.f32.mrb[0].mxu0
      %v222 = vpop.f32.mrb[0].mxu0
      %v223 = vpop.f32.mrb[0].mxu0
      %224 = vdwg.mxu0
      %vm225 = vcmask 523264
      %v226 = vsel %vm225, %v220, 0.0
      %227 = vadd.xlane.f32.xlu0 %v226
      %v228 = vpop.xlane.xlu0 %227
      %v229 = vadd.f32 %v228, 0.0
      %v230 = vmul.f32 %v220, %v220
      %v231 = vsel %vm225, %v230, 0.0
      %232 = vadd.xlane.f32.xlu0 %v231
      %v233 = vpop.xlane.xlu0 %232
      %v234 = vadd.f32 %v233, 0.0
      %s235 = scalar_lea.vmem %s1, 4
      %v236 = vld [vmem:[%s235] sm:$0xf]
      %s237 = scalar_lea.vmem %s165, 8
      %v238 = vld [vmem:[%s237] sm:$0xf]
      %v239 = vld [vmem:[%s237 + $0x4] sm:$0xf]
      %v242 = vunpack.c.l.b16 %v238
      %v243 = vunpack.c.l.b16 %v239
      %v244 = vpack.c.b16 %v243, %v242
      %v247 = vsel %vm181, %v236, 0
      %249 = vmatprep.subr.bf16.mxu0 0
      %250 = vmatpush1.bf16.msra.mxu0 %v244
      %251 = vmatprep.subr.bf16.mxu0 0
      %252 = vmatpush1.bf16.msra.mxu0 0
      %253 = vmatprep.subr.bf16.mxu0 0
      %254 = vmatpush1.bf16.msra.mxu0 0
      %255 = vmatprep.subr.bf16.mxu0 0
      %256 = vmatpush1.bf16.msra.mxu0 0
      %257 = vmatprep.subr.bf16.mxu0 0
      %258 = vmatpush1.bf16.msra.mxu0 0
      %259 = vmatprep.subr.bf16.mxu0 0
      %260 = vmatpush1.bf16.msra.mxu0 0
      %261 = vmatprep.subr.bf16.mxu0 0
      %262 = vmatpush1.bf16.msra.mxu0 0
      %263 = vmatprep.subr.bf16.mxu0 0
      %264 = vmatpush1.bf16.msra.mxu0 0
      %265 = vmatprep.subr.bf16.mxu0 0
      %266 = vmatpush1.bf16.msra.mxu0 0
      %267 = vmatprep.subr.bf16.mxu0 0
      %268 = vmatpush1.bf16.msra.mxu0 0
      %269 = vmatprep.subr.bf16.mxu0 0
      %270 = vmatpush1.bf16.msra.mxu0 0
      %271 = vmatprep.subr.bf16.mxu0 0
      %272 = vmatpush1.bf16.msra.mxu0 0
      %273 = vmatprep.subr.bf16.mxu0 0
      %274 = vmatpush1.bf16.msra.mxu0 0
      %275 = vmatprep.subr.bf16.mxu0 0
      %276 = vmatpush1.bf16.msra.mxu0 0
      %277 = vmatprep.subr.bf16.mxu0 0
      %278 = vmatpush1.bf16.msra.mxu0 0
      %279 = vmatprep.subr.bf16.mxu0 0
      %280 = vmatpush1.bf16.msra.mxu0 0
      %281 = vmatprep.mubr.bf16.mxu0 0
      %282 = vmatmul.mubr.bf16.gmra.mrb[0].mxu0 %v247
      %v283 = vpop.f32.mrb[0].mxu0
      %v284 = vadd.f32 0.0, %v283
      %v285 = vpop.f32.mrb[0].mxu0
      %v286 = vpop.f32.mrb[0].mxu0
      %v287 = vpop.f32.mrb[0].mxu0
      %288 = vdwg.mxu0
      %v289 = vsel %vm225, %v284, 0.0
      %290 = vadd.xlane.f32.xlu0 %v289
      %v291 = vpop.xlane.xlu0 %290
      %v292 = vadd.f32 %v229, %v291
      %v293 = vmul.f32 %v284, %v284
      %v294 = vsel %vm225, %v293, 0.0
      %295 = vadd.xlane.f32.xlu0 %v294
      %v296 = vpop.xlane.xlu0 %295
      %v297 = vadd.f32 %v234, %v296
      %s298 = scalar_lea.vmem %s1, 8
      %v299 = vld [vmem:[%s298] sm:$0xf]
      %s300 = scalar_lea.vmem %s165, 16
      %v301 = vld [vmem:[%s300] sm:$0xf]
      %v302 = vld [vmem:[%s300 + $0x4] sm:$0xf]
      %v305 = vunpack.c.l.b16 %v301
      %v306 = vunpack.c.l.b16 %v302
      %v307 = vpack.c.b16 %v306, %v305
      %v310 = vsel %vm181, %v299, 0
      %312 = vmatprep.subr.bf16.mxu0 0
      %313 = vmatpush1.bf16.msra.mxu0 %v307
      %314 = vmatprep.subr.bf16.mxu0 0
      %315 = vmatpush1.bf16.msra.mxu0 0
      %316 = vmatprep.subr.bf16.mxu0 0
      %317 = vmatpush1.bf16.msra.mxu0 0
      %318 = vmatprep.subr.bf16.mxu0 0
      %319 = vmatpush1.bf16.msra.mxu0 0
      %320 = vmatprep.subr.bf16.mxu0 0
      %321 = vmatpush1.bf16.msra.mxu0 0
      %322 = vmatprep.subr.bf16.mxu0 0
      %323 = vmatpush1.bf16.msra.mxu0 0
      %324 = vmatprep.subr.bf16.mxu0 0
      %325 = vmatpush1.bf16.msra.mxu0 0
      %326 = vmatprep.subr.bf16.mxu0 0
      %327 = vmatpush1.bf16.msra.mxu0 0
      %328 = vmatprep.subr.bf16.mxu0 0
      %329 = vmatpush1.bf16.msra.mxu0 0
      %330 = vmatprep.subr.bf16.mxu0 0
      %331 = vmatpush1.bf16.msra.mxu0 0
      %332 = vmatprep.subr.bf16.mxu0 0
      %333 = vmatpush1.bf16.msra.mxu0 0
      %334 = vmatprep.subr.bf16.mxu0 0
      %335 = vmatpush1.bf16.msra.mxu0 0
      %336 = vmatprep.subr.bf16.mxu0 0
      %337 = vmatpush1.bf16.msra.mxu0 0
      %338 = vmatprep.subr.bf16.mxu0 0
      %339 = vmatpush1.bf16.msra.mxu0 0
      %340 = vmatprep.subr.bf16.mxu0 0
      %341 = vmatpush1.bf16.msra.mxu0 0
      %342 = vmatprep.subr.bf16.mxu0 0
      %343 = vmatpush1.bf16.msra.mxu0 0
      %344 = vmatprep.mubr.bf16.mxu0 0
      %345 = vmatmul.mubr.bf16.gmra.mrb[0].mxu0 %v310
      %v346 = vpop.f32.mrb[0].mxu0
      %v347 = vadd.f32 0.0, %v346
      %v348 = vpop.f32.mrb[0].mxu0
      %v349 = vpop.f32.mrb[0].mxu0
      %v350 = vpop.f32.mrb[0].mxu0
      %351 = vdwg.mxu0
      %v352 = vsel %vm225, %v347, 0.0
      %353 = vadd.xlane.f32.xlu0 %v352
      %v354 = vpop.xlane.xlu0 %353
      %v355 = vadd.f32 %v292, %v354
      %v356 = vmul.f32 %v347, %v347
      %v357 = vsel %vm225, %v356, 0.0
      %358 = vadd.xlane.f32.xlu0 %v357
      %v359 = vpop.xlane.xlu0 %358
      %v360 = vadd.f32 %v297, %v359
      %s361 = scalar_lea.vmem %s1, 12
      %v362 = vld [vmem:[%s361] sm:$0xf]
      %s363 = scalar_lea.vmem %s165, 24
      %v364 = vld [vmem:[%s363] sm:$0xf]
      %v365 = vld [vmem:[%s363 + $0x4] sm:$0xf]
      %v368 = vunpack.c.l.b16 %v364
      %v369 = vunpack.c.l.b16 %v365
      %v370 = vpack.c.b16 %v369, %v368
      %v373 = vsel %vm181, %v362, 0
      %375 = vmatprep.subr.bf16.mxu0 0
      %376 = vmatpush1.bf16.msra.mxu0 %v370
      %377 = vmatprep.subr.bf16.mxu0 0
      %378 = vmatpush1.bf16.msra.mxu0 0
      %379 = vmatprep.subr.bf16.mxu0 0
      %380 = vmatpush1.bf16.msra.mxu0 0
      %381 = vmatprep.subr.bf16.mxu0 0
      %382 = vmatpush1.bf16.msra.mxu0 0
      %383 = vmatprep.subr.bf16.mxu0 0
      %384 = vmatpush1.bf16.msra.mxu0 0
      %385 = vmatprep.subr.bf16.mxu0 0
      %386 = vmatpush1.bf16.msra.mxu0 0
      %387 = vmatprep.subr.bf16.mxu0 0
      %388 = vmatpush1.bf16.msra.mxu0 0
      %389 = vmatprep.subr.bf16.mxu0 0
      %390 = vmatpush1.bf16.msra.mxu0 0
      %391 = vmatprep.subr.bf16.mxu0 0
      %392 = vmatpush1.bf16.msra.mxu0 0
      %393 = vmatprep.subr.bf16.mxu0 0
      %394 = vmatpush1.bf16.msra.mxu0 0
      %395 = vmatprep.subr.bf16.mxu0 0
      %396 = vmatpush1.bf16.msra.mxu0 0
      %397 = vmatprep.subr.bf16.mxu0 0
      %398 = vmatpush1.bf16.msra.mxu0 0
      %399 = vmatprep.subr.bf16.mxu0 0
      %400 = vmatpush1.bf16.msra.mxu0 0
      %401 = vmatprep.subr.bf16.mxu0 0
      %402 = vmatpush1.bf16.msra.mxu0 0
      %403 = vmatprep.subr.bf16.mxu0 0
      %404 = vmatpush1.bf16.msra.mxu0 0
      %405 = vmatprep.subr.bf16.mxu0 0
      %406 = vmatpush1.bf16.msra.mxu0 0
      %407 = vmatprep.mubr.bf16.mxu0 0
      %408 = vmatmul.mubr.bf16.gmra.mrb[0].mxu0 %v373
      %v409 = vpop.f32.mrb[0].mxu0
      %v410 = vadd.f32 0.0, %v409
      %v411 = vpop.f32.mrb[0].mxu0
      %v412 = vpop.f32.mrb[0].mxu0
      %v413 = vpop.f32.mrb[0].mxu0
      %414 = vdwg.mxu0
      %v415 = vsel %vm225, %v410, 0.0
      %416 = vadd.xlane.f32.xlu0 %v415
      %v417 = vpop.xlane.xlu0 %416
      %v418 = vadd.f32 %v355, %v417
      %v419 = vmul.f32 %v410, %v410
      %v420 = vsel %vm225, %v419, 0.0
      %421 = vadd.xlane.f32.xlu0 %v420
      %v422 = vpop.xlane.xlu0 %421
      %v423 = vadd.f32 %v360, %v422
      %v424 = vmul.f32 %v418, 0.00390625
      %v425 = vmul.f32 %v423, 0.00390625
      %v426 = vmul.f32 %v424, %v424
      %v427 = vsub.f32 %v425, %v426
      %v428 = vld [vmem:[%s2] sm:$0xff]
      %v429 = vadd.f32 %v427, 1e-05
      %v430 = vrsqrt.pop %v429
      %v431 = vmul.f32 %v430, %v428
      %v432 = vmul.f32 %v424, %v431
      %434 = vrot.lane.b32.xlu0 %v432, 1
      %v435 = vpop.permute.xlu0 %434
      %v437 = vsub.f32 %v428, %v435
      %439 = vset.pattern.permute.xlu0 0
      %440 = vperm.xlu0 %439, %v431
      %v441 = vpop.permute.xlu0 %440
      %v443 = vmul.f32 %v220, %v441
      %445 = vset.pattern.permute.xlu0 1
      %446 = vperm.xlu0 %445, %v437
      %v447 = vpop.permute.xlu0 %446
      %v449 = vadd.f32 %v443, %v447
      %v450 = vpack.c.bf16 %v449, %v449
      %vm451 = vcmask 519168
      %452 = vst.msk [vmem:[%s170] sm:$0xf] %vm451, %v450
      %v453 = vmul.f32 %v284, %v441
      %v454 = vadd.f32 %v453, %v447
      %v455 = vpack.c.bf16 %v454, %v454
      %s456 = scalar_lea.vmem %s170, 4
      %457 = vst.msk [vmem:[%s456] sm:$0xf] %vm451, %v455
      %v458 = vmul.f32 %v347, %v441
      %v459 = vadd.f32 %v458, %v447
      %v460 = vpack.c.bf16 %v459, %v459
      %s461 = scalar_lea.vmem %s170, 8
      %462 = vst.msk [vmem:[%s461] sm:$0xf] %vm451, %v460
      %v463 = vmul.f32 %v410, %v441
      %v464 = vadd.f32 %v463, %v447
      %v465 = vpack.c.bf16 %v464, %v464
      %s466 = scalar_lea.vmem %s170, 12
      %467 = vst.msk [vmem:[%s466] sm:$0xf] %vm451, %v465
      %p468 = scmp.lt.s32.totalorder %s14, 1
      %s469 = scalar_select %p468, %s14, 1
      %s470 = smul.addr %s469, 4
      %s471 = smul.addr %s470, 4
      %s472 = scalar_lea.vmem %s3, %s471
      // Predicated region
      $region33: #{deconvolutional_layer.1} parent=31 // pred_check
        %p473 = pneg %p100
      $region34: #{deconvolutional_layer.1} parent=31 // pred_check_branch
        %475 = sbr.rel (%p473) target = $region36
      $region35: #{deconvolutional_layer.1} parent=31 // pred_region
        _
      $region36: #{deconvolutional_layer.1} parent=31 // pred_fallthru
        _
    $region32: #{deconvolutional_layer.1} parent=5 // pred_fallthru
      _
    %p476 = scmp.le.s32.totalorder 2, %s9
    // Predicated region
    $region37: #{deconvolutional_layer.1} parent=5 // pred_check
      %p477 = pneg %p476
    $region38: #{deconvolutional_layer.1} parent=5 // pred_check_branch
      %479 = sbr.rel (%p477) target = $region40
    $region39: #{deconvolutional_layer.1} parent=5 // pred_region
      %s480 = ssub.s32 %s9, 2
      // Predicated region
      $region41: #{deconvolutional_layer.1} parent=39 // pred_check
        %p481 = pneg %p106
      $region42: #{deconvolutional_layer.1} parent=39 // pred_check_branch
        %483 = sbr.rel (%p481) target = $region44
      $region43: #{deconvolutional_layer.1} parent=39 // pred_region
        %p484 = scmp.lt.s32.totalorder %s15, 1
        %s485 = scalar_select %p484, %s15, 1
        %s486 = smul.addr %s485, 4
        %s487 = smul.addr %s486, 4
        %s488 = scalar_lea.vmem %s3, %s487
      $region44: #{deconvolutional_layer.1} parent=39 // pred_fallthru
        _
    $region40: #{deconvolutional_layer.1} parent=5 // pred_fallthru
      _
  $region6: #{deconvolutional_layer.1} parent=0 // loop_footer
    %s13 = sadd.s32 1, %s9
  $region7: #{deconvolutional_layer.1} parent=0 // loop_footer_branch
    %8 = sbr.rel target = $region3
  $region8: #{deconvolutional_layer.1} parent=0 // loop_exit
    _

</llo_original>
